<compile_context>
chip_gen: v6e
topology: v6e:2x2x1
jax: 0.10.0
libtpu: 0.0.40
codegen_flags: <defaults>
</compile_context>

<pallas_src>
import functools

import jax
import jax.numpy as jnp
from jax.experimental import pallas as pl
from jax.experimental.pallas import tpu as pltpu


def _round_up(x, m):
    return ((x + m - 1) // m) * m


def gcn_agg_kernel(x_ref, wt_ref, b_ref, o_ref):
    # x_ref : (n, TM, f_in)        f32 node-tile of the stacked inputs
    # wt_ref: (f_in, f_out_p)      W.T pre-scaled by 1/(n*sqrt(n+1)), zero-padded cols
    # b_ref : (1, f_out_p)         bias, zero-padded
    # o_ref : (TM, f_out_p)
    xs = jnp.sum(x_ref[...], axis=0)                       # (TM, f_in) stack-sum
    y = jnp.dot(xs, wt_ref[...],
                preferred_element_type=jnp.float32)        # (TM, f_out_p) on MXU
    y = y + b_ref[...]                                     # broadcast bias
    o_ref[...] = jnp.maximum(y, 0.0).astype(o_ref.dtype)   # ReLU


def _pick_tm(nodes, n, f_in, f_out_p, budget_bytes=24 << 20):
    """Largest node tile (multiple of 8, <=512) whose double-buffered f32
    footprint fits a VMEM budget that is safe even on v7x (64 MiB physical)."""
    per_row = 2 * 4 * (n * f_in + f_out_p)      # double-buffered in + out, f32
    tm = max(8, min(512, budget_bytes // max(per_row, 1)))
    tm = max(8, (tm // 8) * 8)
    tm = min(tm, _round_up(nodes, 8))           # never bigger than padded nodes
    return tm


def gcn_agg(x_list, weight, bias, *, tm=None):
    """x_list: list of (1, nodes, in_feature) arrays.
    weight:   (out_feature, in_feature)  (PyTorch nn.Linear layout)
    bias:     (out_feature,)
    returns:  (nodes, out_feature)
    """
    n = len(x_list)
    # Single concatenate gives (n, nodes, f_in) directly (each x_i has batch=1);
    # this is the ".squeeze(0)" of the module and avoids a stack+reshape pass.
    x = jnp.concatenate(x_list, axis=0).astype(jnp.float32)   # (n, nodes, f_in)
    nodes, f_in = x.shape[1], x.shape[2]
    f_out = weight.shape[0]

    # Fold mean (1/n) and the 1/sqrt(n+1) scaling into the weight once.
    scale = 1.0 / (n * (n + 1) ** 0.5)
    f_out_p = _round_up(f_out, 128)                            # lane-dense output
    wt = (weight.T * scale).astype(jnp.float32)                # (f_in, f_out)
    if f_out_p != f_out:
        wt = jnp.pad(wt, ((0, 0), (0, f_out_p - f_out)))
    b2d = bias.astype(jnp.float32).reshape(1, f_out)
    if f_out_p != f_out:
        b2d = jnp.pad(b2d, ((0, 0), (0, f_out_p - f_out)))

    if tm is None:
        tm = _pick_tm(nodes, n, f_in, f_out_p)
    tm = max(8, (tm // 8) * 8)
    nodes_p = _round_up(nodes, tm)
    if nodes_p != nodes:
        x = jnp.pad(x, ((0, 0), (0, nodes_p - nodes), (0, 0)))
    grid = (nodes_p // tm,)

    # VMEM: double-buffered x tile + out tile, plus resident weight/bias.
    vmem_need = 4 * (2 * (n * tm * f_in + tm * f_out_p)
                     + 2 * (f_in * f_out_p + f_out_p))
    vmem_limit = int(min(max(2 * vmem_need, 32 << 20), 60 << 20))

    cost = pl.CostEstimate(
        flops=2 * nodes_p * f_in * f_out_p + n * nodes_p * f_in,
        transcendentals=0,
        bytes_accessed=4 * (n * nodes_p * f_in + f_in * f_out_p
                            + f_out_p + nodes_p * f_out_p),
    )

    out = pl.pallas_call(
        gcn_agg_kernel,
        out_shape=jax.ShapeDtypeStruct((nodes_p, f_out_p), jnp.float32),
        grid_spec=pltpu.PrefetchScalarGridSpec(
            num_scalar_prefetch=0,
            grid=grid,
            in_specs=[
                pl.BlockSpec((n, tm, f_in), lambda i: (0, i, 0)),
                pl.BlockSpec((f_in, f_out_p), lambda i: (0, 0)),
                pl.BlockSpec((1, f_out_p), lambda i: (0, 0)),
            ],
            out_specs=pl.BlockSpec((tm, f_out_p), lambda i: (i, 0)),
        ),
        compiler_params=pltpu.CompilerParams(
            dimension_semantics=("parallel",),
            vmem_limit_bytes=vmem_limit,
        ),
        cost_estimate=cost,
    )(x, wt, b2d)

    return out[:nodes, :f_out]


def gcn_agg_ref(x_list, weight, bias):
    n = len(x_list)
    y = jnp.stack(x_list, axis=0) / jnp.sqrt(jnp.float32(n + 1))
    y = jnp.einsum("nbsf,of->nbso", y, weight)
    y = y.mean(axis=0) + bias
    y = jnp.maximum(y, 0.0)
    return y[0]  # squeeze(0)


if __name__ == "__main__":
    key = jax.random.PRNGKey(0)

    # --- Case 1: shapes implied by the module (small) ---------------------
    n_inputs = 4
    nodes = 16
    in_feature = 32
    out_feature = 32

    k_x, k_w, k_x2, k_w2, k_b2 = jax.random.split(key, 5)
    x_keys = jax.random.split(k_x, n_inputs)
    x_list = [jax.random.normal(k, (1, nodes, in_feature), dtype=jnp.float32)
              for k in x_keys]

    bound = 1.0 / (in_feature ** 0.5)
    weight = jax.random.uniform(k_w, (out_feature, in_feature),
                                minval=-bound, maxval=bound, dtype=jnp.float32)
    bias = jnp.zeros((out_feature,), dtype=jnp.float32)

    out = jax.block_until_ready(gcn_agg(x_list, weight, bias))
    ref = gcn_agg_ref(x_list, weight, bias)
    assert out.shape == (nodes, out_feature)
    assert jnp.allclose(out, ref, atol=1e-5, rtol=1e-5)

    # --- Case 2: exercise multi-tile grid + node/feature padding ----------
    n2, nodes2, f_in2, f_out2 = 3, 200, 64, 48
    x2_keys = jax.random.split(k_x2, n2)
    x2_list = [jax.random.normal(k, (1, nodes2, f_in2), dtype=jnp.float32)
               for k in x2_keys]
    bound2 = 1.0 / (f_in2 ** 0.5)
    weight2 = jax.random.uniform(k_w2, (f_out2, f_in2),
                                 minval=-bound2, maxval=bound2,
                                 dtype=jnp.float32)
    bias2 = jax.random.uniform(k_b2, (f_out2,), minval=-0.1, maxval=0.1,
                               dtype=jnp.float32)

    out2 = jax.block_until_ready(gcn_agg(x2_list, weight2, bias2, tm=64))
    ref2 = gcn_agg_ref(x2_list, weight2, bias2)
    assert out2.shape == (nodes2, f_out2)
    assert jnp.allclose(out2, ref2, atol=1e-5, rtol=1e-5)

    print("KERNEL_OK")
</pallas_src>

<mosaic_0001>
module attributes {stable_mosaic.version = 11 : i64} {
  func.func @gcn_agg_kernel(%arg0: i32, %arg1: memref<4x16x32xf32, #tpu.memory_space<vmem>>, %arg2: memref<32x128xf32, #tpu.memory_space<vmem>>, %arg3: memref<1x128xf32, #tpu.memory_space<vmem>>, %arg4: memref<16x128xf32, #tpu.memory_space<vmem>>) attributes {dimension_semantics = [#tpu.dimension_semantics<parallel>], iteration_bounds = array<i64: 1>, scalar_prefetch = 0 : i64, scratch_operands = 0 : i64, tpu.core_type = #tpu.core_type<tc>, window_params = [{transform_indices = @transform_0, window_bounds = array<i64: 4, 16, 32>}, {pipeline_mode = #tpu.pipeline_mode<synchronous>, transform_indices = @transform_1, window_bounds = array<i64: 32, 128>}, {pipeline_mode = #tpu.pipeline_mode<synchronous>, transform_indices = @transform_2, window_bounds = array<i64: 1, 128>}, {transform_indices = @transform_3, window_bounds = array<i64: 16, 128>}]} {
    %c0 = arith.constant 0 : index
    %c0_0 = arith.constant 0 : index
    %c0_1 = arith.constant 0 : index
    %0 = vector.load %arg1[%c0, %c0_0, %c0_1] : memref<4x16x32xf32, #tpu.memory_space<vmem>>, vector<4x16x32xf32>
    %cst = arith.constant dense<0.000000e+00> : vector<16x32xf32>
    %1 = vector.multi_reduction <add>, %0, %cst [0] : vector<4x16x32xf32> to vector<16x32xf32>
    %c0_2 = arith.constant 0 : index
    %c0_3 = arith.constant 0 : index
    %2 = vector.load %arg2[%c0_2, %c0_3] : memref<32x128xf32, #tpu.memory_space<vmem>>, vector<32x128xf32>
    %cst_4 = arith.constant dense<0.000000e+00> : vector<16x128xf32>
    %3 = tpu.matmul %1, %2, %cst_4 {dimension_numbers = #tpu.dot_dimension_numbers<[1], [0], [0], [1], [0, 0, 1, 1], [], []>} : vector<16x32xf32>, vector<32x128xf32>, vector<16x128xf32> -> vector<16x128xf32>
    %c0_5 = arith.constant 0 : index
    %c0_6 = arith.constant 0 : index
    %4 = vector.load %arg3[%c0_5, %c0_6] : memref<1x128xf32, #tpu.memory_space<vmem>>, vector<1x128xf32>
    %5 = vector.broadcast %4 : vector<1x128xf32> to vector<16x128xf32>
    %6 = arith.addf %3, %5 : vector<16x128xf32>
    %cst_7 = arith.constant 0.000000e+00 : f32
    %7 = vector.broadcast %cst_7 : f32 to vector<16x128xf32>
    %8 = arith.maximumf %6, %7 : vector<16x128xf32>
    %c0_8 = arith.constant 0 : index
    %c0_9 = arith.constant 0 : index
    %9 = vector.load %arg4[%c0_8, %c0_9] : memref<16x128xf32, #tpu.memory_space<vmem>>, vector<16x128xf32>
    tpu.vector_store %arg4[%c0_8, %c0_9], %8 {strides = array<i32>} : memref<16x128xf32, #tpu.memory_space<vmem>>, vector<16x128xf32>,
    return
  }
  func.func @transform_0(%arg0: i32) -> (i32, i32, i32) {
    %c0_i32 = arith.constant 0 : i32
    %c0_i32_0 = arith.constant 0 : i32
    %c0_i32_1 = arith.constant 0 : i32
    return %c0_i32, %arg0, %c0_i32_0 : i32, i32, i32
  }
  func.func @transform_1(%arg0: i32) -> (i32, i32) {
    %c0_i32 = arith.constant 0 : i32
    %c0_i32_0 = arith.constant 0 : i32
    %c0_i32_1 = arith.constant 0 : i32
    return %c0_i32, %c0_i32_0 : i32, i32
  }
  func.func @transform_2(%arg0: i32) -> (i32, i32) {
    %c0_i32 = arith.constant 0 : i32
    %c0_i32_0 = arith.constant 0 : i32
    %c0_i32_1 = arith.constant 0 : i32
    return %c0_i32, %c0_i32_0 : i32, i32
  }
  func.func @transform_3(%arg0: i32) -> (i32, i32) {
    %c0_i32 = arith.constant 0 : i32
    %c0_i32_0 = arith.constant 0 : i32
    return %arg0, %c0_i32 : i32, i32
  }
}

</mosaic_0001>

<llo_original>
// kernel: tpu_custom_call.1
$region0: #{tpu_custom_call.1}
  #allocation0 [shape = 'u32[]', space=smem, size = 0x4, offset = 0x4, fixed_abs, tag = 'smem constant byte address 0x4 - core index']
  #allocation1 [shape = 'u32[144,128]{1,0:T(1,128)}', space=vmem, size = 0x12000, scoped, tag = 'internal scratch']
  %s0 = inlined_call_operand.hbm [shape: f32[4,16,32], index: 0, kind: input, shape index: {}]
  %s1 = inlined_call_operand.hbm [shape: f32[32,128], index: 1, kind: input, shape index: {}]
  %s2 = inlined_call_operand.vmem [shape: f32[1,128], index: 2, kind: input, shape index: {}]
  %s3 = inlined_call_operand.hbm [shape: f32[16,128], index: 3, kind: output, shape index: {}]
  %s4 = sld [smem:[#allocation0]]
  $region30: #{tpu_custom_call.1} parent=0
    _
  %s6 = ssub.s32 1, %s4
  %s7 = scalar_select 0, %s6, %s4
  $region1: #{tpu_custom_call.1} parent=0
    #allocation2 [shape = 'u8[32768]{0}', space=vmem, size = 0x8000, scoped, tag = 'input window, operand 0, single buffered']
    #allocation3 [shape = 's32[1]{0}', space=sflag, size = 0x4, scoped, tag = 'scoped memory for tpu_custom_call.1']
    #allocation4 [shape = 's32[1]{0}', space=sflag, size = 0x4, scoped, tag = 'scoped memory for tpu_custom_call.1']
    #allocation5 [shape = 'u8[16384]{0}', space=vmem, size = 0x4000, scoped, tag = 'input window, operand 1, single buffered']
    #allocation6 [shape = 's32[1]{0}', space=sflag, size = 0x4, scoped, tag = 'scoped memory for tpu_custom_call.1']
    #allocation7 [shape = 'u8[8192]{0}', space=vmem, size = 0x2000, scoped, tag = 'output window, operand 0, single buffered']
    %8 = vsyncpa [#allocation3], 0
    %9 = vsyncpa [#allocation6], 0
    %10 = vsyncpa [#allocation4], 0
    // Predicated region
    $region2: #{tpu_custom_call.1} parent=1 // pred_check
      _
    $region3: #{tpu_custom_call.1} parent=1 // pred_check_branch
      %12 = sbr.rel (0) target = $region5
    $region4: #{tpu_custom_call.1} parent=1 // pred_region
      %s14 = ssub.s32 1024, 1024
      %15 = vsyncadd [#allocation3], %s14
      %s16 = sshll.u32 [#allocation2], 4
      %s17 = int_to_ptr.vmem [resolvable:$true] %s16
      %22 = dma.hbm_to_vmem [thread:$0]  %s0, 1024, %s17, [#allocation3], 128, 128, 8
    $region5: #{tpu_custom_call.1} parent=1 // pred_fallthru
      _
    // Predicated region
    $region6: #{tpu_custom_call.1} parent=1 // pred_check
      _
    $region7: #{tpu_custom_call.1} parent=1 // pred_check_branch
      %24 = sbr.rel (0) target = $region9
    $region8: #{tpu_custom_call.1} parent=1 // pred_region
      %s26 = ssub.s32 512, 512
      %27 = vsyncadd [#allocation6], %s26
      %s28 = sshll.u32 [#allocation5], 4
      %s29 = int_to_ptr.vmem [resolvable:$true] %s28
      %34 = dma.hbm_to_vmem [thread:$0]  %s1, 512, %s29, [#allocation6], 128, 128, 8
    $region9: #{tpu_custom_call.1} parent=1 // pred_fallthru
      _
    // Predicated region
    $region10: #{tpu_custom_call.1} parent=1 // pred_check
      _
    $region11: #{tpu_custom_call.1} parent=1 // pred_check_branch
      %36 = sbr.rel (0) target = $region13
    $region12: #{tpu_custom_call.1} parent=1 // pred_region
      _
    $region13: #{tpu_custom_call.1} parent=1 // pred_fallthru
      _
    // Predicated region
    $region14: #{tpu_custom_call.1} parent=1 // pred_check
      _
    $region15: #{tpu_custom_call.1} parent=1 // pred_check_branch
      %38 = sbr.rel (0) target = $region17
    $region16: #{tpu_custom_call.1} parent=1 // pred_region
      %39 = dma.done [#allocation3], 1024
    $region17: #{tpu_custom_call.1} parent=1 // pred_fallthru
      _
    // Predicated region
    $region18: #{tpu_custom_call.1} parent=1 // pred_check
      _
    $region19: #{tpu_custom_call.1} parent=1 // pred_check_branch
      %41 = sbr.rel (0) target = $region21
    $region20: #{tpu_custom_call.1} parent=1 // pred_region
      %42 = dma.done [#allocation6], 512
    $region21: #{tpu_custom_call.1} parent=1 // pred_fallthru
      _
    %v43 = vld [vmem:[#allocation2] sm:$0xff]
    %v44 = vld [vmem:[#allocation2 + $0x8] sm:$0xff]
    %v45 = vld [vmem:[#allocation2 + $0x10] sm:$0xff]
    %v46 = vld [vmem:[#allocation2 + $0x18] sm:$0xff]
    %v47 = vld [vmem:[#allocation2 + $0x20] sm:$0xff]
    %v48 = vld [vmem:[#allocation2 + $0x28] sm:$0xff]
    %v49 = vld [vmem:[#allocation2 + $0x30] sm:$0xff]
    %v50 = vld [vmem:[#allocation2 + $0x38] sm:$0xff]
    %vm51 = vcmask 261120
    %v52 = vsel %vm51, %v43, 0.0
    %v53 = vsel %vm51, %v45, 0.0
    %v54 = vadd.f32 %v52, %v53
    %v55 = vsel %vm51, %v47, 0.0
    %v56 = vadd.f32 %v54, %v55
    %v57 = vsel %vm51, %v49, 0.0
    %v58 = vadd.f32 %v56, %v57
    %v59 = vsel %vm51, %v44, 0.0
    %v60 = vsel %vm51, %v46, 0.0
    %v61 = vadd.f32 %v59, %v60
    %v62 = vsel %vm51, %v48, 0.0
    %v63 = vadd.f32 %v61, %v62
    %v64 = vsel %vm51, %v50, 0.0
    %v65 = vadd.f32 %v63, %v64
    %v66 = vld [vmem:[#allocation5] sm:$0xff]
    %v67 = vld [vmem:[#allocation5 + $0x8] sm:$0xff]
    %v68 = vld [vmem:[#allocation5 + $0x10] sm:$0xff]
    %v69 = vld [vmem:[#allocation5 + $0x18] sm:$0xff]
    %v70 = vld [vmem:[%s2] sm:$0x1]
    %v72 = vlaneseq
    %v73 = vshrl.u32 %v72, 7
    %v74 = vsub.s32 0, %v73
    %v75 = vrot.slane %v70, %v74
    %v78 = vsel %vm51, %v58, 0
    %v81 = vsel %vm51, %v65, 0
    %83 = vmatprep.subr.mxu0 0.0
    %84 = vmatpush1.msra.mxu0 0.0
    %85 = vmatprep.subr.mxu0 0.0
    %86 = vmatpush1.msra.mxu0 0.0
    %87 = vmatprep.subr.mxu0 0.0
    %88 = vmatpush1.msra.mxu0 0.0
    %89 = vmatprep.subr.mxu0 0.0
    %90 = vmatpush1.msra.mxu0 0.0
    %91 = vmatprep.subr.mxu0 0.0
    %92 = vmatpush1.msra.mxu0 0.0
    %93 = vmatprep.subr.mxu0 0.0
    %94 = vmatpush1.msra.mxu0 0.0
    %95 = vmatprep.subr.mxu0 0.0
    %96 = vmatpush1.msra.mxu0 0.0
    %97 = vmatprep.subr.mxu0 0.0
    %98 = vmatpush1.msra.mxu0 0.0
    %99 = vmatprep.subr.mxu0 0.0
    %100 = vmatpush1.msra.mxu0 0.0
    %101 = vmatprep.subr.mxu0 0.0
    %102 = vmatpush1.msra.mxu0 0.0
    %103 = vmatprep.subr.mxu0 0.0
    %104 = vmatpush1.msra.mxu0 0.0
    %105 = vmatprep.subr.mxu0 0.0
    %106 = vmatpush1.msra.mxu0 0.0
    %107 = vmatprep.subr.mxu0 0.0
    %108 = vmatpush1.msra.mxu0 %v69
    %109 = vmatprep.subr.mxu0 0.0
    %110 = vmatpush1.msra.mxu0 %v68
    %111 = vmatprep.subr.mxu0 0.0
    %112 = vmatpush1.msra.mxu0 %v67
    %113 = vmatprep.subr.mxu0 0.0
    %114 = vmatpush1.msra.mxu0 %v66
    %115 = vmatprep.subr.mxu0 0.0
    %116 = vmatpush2.msra.mxu0 0.0
    %117 = vmatprep.subr.mxu0 0.0
    %118 = vmatpush2.msra.mxu0 0.0
    %119 = vmatprep.subr.mxu0 0.0
    %120 = vmatpush2.msra.mxu0 0.0
    %121 = vmatprep.subr.mxu0 0.0
    %122 = vmatpush2.msra.mxu0 0.0
    %123 = vmatprep.subr.mxu0 0.0
    %124 = vmatpush2.msra.mxu0 0.0
    %125 = vmatprep.subr.mxu0 0.0
    %126 = vmatpush2.msra.mxu0 0.0
    %127 = vmatprep.subr.mxu0 0.0
    %128 = vmatpush2.msra.mxu0 0.0
    %129 = vmatprep.subr.mxu0 0.0
    %130 = vmatpush2.msra.mxu0 0.0
    %131 = vmatprep.subr.mxu0 0.0
    %132 = vmatpush2.msra.mxu0 0.0
    %133 = vmatprep.subr.mxu0 0.0
    %134 = vmatpush2.msra.mxu0 0.0
    %135 = vmatprep.subr.mxu0 0.0
    %136 = vmatpush2.msra.mxu0 0.0
    %137 = vmatprep.subr.mxu0 0.0
    %138 = vmatpush2.msra.mxu0 0.0
    %139 = vmatprep.subr.mxu0 0.0
    %140 = vmatpush2.msra.mxu0 0.0
    %141 = vmatprep.subr.mxu0 0.0
    %142 = vmatpush2.msra.mxu0 0.0
    %143 = vmatprep.subr.mxu0 0.0
    %144 = vmatpush2.msra.mxu0 0.0
    %145 = vmatprep.subr.mxu0 0.0
    %146 = vmatpush2.msra.mxu0 0.0
    %147 = vmatprep.mubr.f32.mxu0 0.0
    %148 = vmatmul.mubr.f32.gmra.mxu0 %v78
    %v149 = vpop.f32.mrf.mxu0
    %v150 = vadd.f32 %v75, %v149
    %v151 = vpop.f32.mrf.mxu0
    %152 = vmatprep.mubr.f32.mxu0 0.0
    %153 = vmatmul.mubr.f32.gmra.mxu0 %v81
    %v154 = vpop.f32.mrf.mxu0
    %v155 = vadd.f32 %v75, %v154
    %v156 = vpop.f32.mrf.mxu0
    %157 = vdwg.mxu0
    %v158 = vmax.f32 %v150, 0.0
    %v159 = vmax.f32 %v155, 0.0
    %160 = vst [vmem:[#allocation7] sm:$0xff] %v158
    %161 = vst [vmem:[#allocation7 + $0x8] sm:$0xff] %v159
    // Predicated region
    $region22: #{tpu_custom_call.1} parent=1 // pred_check
      _
    $region23: #{tpu_custom_call.1} parent=1 // pred_check_branch
      %163 = sbr.rel (0) target = $region25
    $region24: #{tpu_custom_call.1} parent=1 // pred_region
      %s165 = ssub.s32 256, 256
      %166 = vsyncadd [#allocation4], %s165
      %s167 = sshll.u32 [#allocation7], 4
      %s168 = int_to_ptr.vmem [resolvable:$true] %s167
      %173 = dma.vmem_to_hbm [thread:$0]  %s168, 256, %s3, [#allocation4], 128, 128, 8
    $region25: #{tpu_custom_call.1} parent=1 // pred_fallthru
      _
    // Predicated region
    $region26: #{tpu_custom_call.1} parent=1 // pred_check
      _
    $region27: #{tpu_custom_call.1} parent=1 // pred_check_branch
      %175 = sbr.rel (0) target = $region29
    $region28: #{tpu_custom_call.1} parent=1 // pred_region
      %176 = dma.done [#allocation4], 256
    $region29: #{tpu_custom_call.1} parent=1 // pred_fallthru
      _
    %177 = vsyncpa [#allocation3], 1
    %178 = vsyncpa [#allocation6], 1
    %179 = vsyncpa [#allocation4], 1

</llo_original>
